<compile_context>
chip_gen: v7x
topology: tpu7x:2x2x1
jax: 0.10.0
libtpu: 0.0.40
codegen_flags: <defaults>
</compile_context>

<pallas_src>
import math

import jax
import jax.numpy as jnp
from jax.experimental import pallas as pl
from jax.experimental.pallas import tpu as pltpu

LANE = 128        # vreg lane width (last dim of every tile)
BLOCK_R = 2048    # rows per grid step -> 1 MiB f32 / 0.5 MiB bf16 per input block


def _cdiv(a, b):
    return -(-a // b)


# ---------------------------------------------------------------------------
# Glue: flatten to (rows, 128) in native dtype, no padding copy.
# ---------------------------------------------------------------------------
def _prep(x, neutral):
    """Return (main (rows,128) array in native dtype, tail 1-D array or None).

    The main part is a pure reshape (no copy, no cast). Elements that do not
    fill a whole 128-lane row are returned as `tail` and reduced in plain JAX.
    If the tensor has fewer than 128 elements, `main` is a reduction-neutral
    dummy block.
    """
    flat = jnp.ravel(x)
    n = flat.shape[0]
    rem = n % LANE
    main_n = n - rem
    if main_n > 0:
        main = (flat[:main_n] if rem else flat).reshape(main_n // LANE, LANE)
    else:
        main = jnp.full((8, LANE), neutral, dtype=jnp.float32)
    tail = flat[main_n:] if rem else None
    return main, tail


# ---------------------------------------------------------------------------
# Fused reduction kernel: sum(log y), sum(log z), sum((a-b)^2) in one launch.
# ---------------------------------------------------------------------------
def _fused_reduce(y2, z2, a2, b2):
    Ry, Rz, Rs = y2.shape[0], z2.shape[0], a2.shape[0]
    bry = min(BLOCK_R, Ry)
    brz = min(BLOCK_R, Rz)
    brs = min(BLOCK_R, Rs)
    nby = _cdiv(Ry, bry)
    nbz = _cdiv(Rz, brz)
    nbs = _cdiv(Rs, brs)
    K = max(nby, nbz, nbs)          # total block steps needed
    k_half = _cdiv(K, 2)            # steps per core (axis 0 of the grid = 2 cores)

    def kernel(y_ref, z_ref, a_ref, b_ref,
               py_ref, pz_ref, ps_ref,
               acc_y, acc_z, acc_s):
        c = pl.program_id(0)
        i = pl.program_id(1)
        g = c * k_half + i          # global block step handled this iteration

        @pl.when(i == 0)
        def _():
            acc_y[...] = jnp.zeros_like(acc_y)
            acc_z[...] = jnp.zeros_like(acc_z)
            acc_s[...] = jnp.zeros_like(acc_s)

        def accum_log(ref, acc, nb, br, rows_total):
            @pl.when(g < nb)
            def _():
                t = ref[...].astype(jnp.float32)
                if rows_total % br != 0:  # static: only trace mask if ragged
                    valid = rows_total - g * br
                    row_ids = jax.lax.broadcasted_iota(jnp.int32, (br, LANE), 0)
                    t = jnp.where(row_ids < valid, t, 1.0)  # log(1) == 0
                acc[...] += jnp.sum(jnp.log(t), axis=0, keepdims=True)

        accum_log(y_ref, acc_y, nby, bry, Ry)
        accum_log(z_ref, acc_z, nbz, brz, Rz)

        @pl.when(g < nbs)
        def _():
            d = a_ref[...].astype(jnp.float32) - b_ref[...].astype(jnp.float32)
            if Rs % brs != 0:
                valid = Rs - g * brs
                row_ids = jax.lax.broadcasted_iota(jnp.int32, (brs, LANE), 0)
                d = jnp.where(row_ids < valid, d, 0.0)
            acc_s[...] += jnp.sum(d * d, axis=0, keepdims=True)

        @pl.when(i == k_half - 1)
        def _():
            py_ref[...] = jnp.sum(acc_y[...]).reshape(1, 1, 1)
            pz_ref[...] = jnp.sum(acc_z[...]).reshape(1, 1, 1)
            ps_ref[...] = jnp.sum(acc_s[...]).reshape(1, 1, 1)

    grid_spec = pltpu.PrefetchScalarGridSpec(
        num_scalar_prefetch=0,
        grid=(2, k_half),
        in_specs=[
            pl.BlockSpec((bry, LANE),
                         lambda c, i: (jnp.minimum(c * k_half + i, nby - 1), 0)),
            pl.BlockSpec((brz, LANE),
                         lambda c, i: (jnp.minimum(c * k_half + i, nbz - 1), 0)),
            pl.BlockSpec((brs, LANE),
                         lambda c, i: (jnp.minimum(c * k_half + i, nbs - 1), 0)),
            pl.BlockSpec((brs, LANE),
                         lambda c, i: (jnp.minimum(c * k_half + i, nbs - 1), 0)),
        ],
        out_specs=[
            pl.BlockSpec((1, 1, 1), lambda c, i: (c, 0, 0)),
            pl.BlockSpec((1, 1, 1), lambda c, i: (c, 0, 0)),
            pl.BlockSpec((1, 1, 1), lambda c, i: (c, 0, 0)),
        ],
        scratch_shapes=[
            pltpu.VMEM((1, LANE), jnp.float32),
            pltpu.VMEM((1, LANE), jnp.float32),
            pltpu.VMEM((1, LANE), jnp.float32),
        ],
    )

    py, pz, ps = pl.pallas_call(
        kernel,
        out_shape=(
            jax.ShapeDtypeStruct((2, 1, 1), jnp.float32),
            jax.ShapeDtypeStruct((2, 1, 1), jnp.float32),
            jax.ShapeDtypeStruct((2, 1, 1), jnp.float32),
        ),
        grid_spec=grid_spec,
        compiler_params=pltpu.CompilerParams(
            dimension_semantics=("parallel", "arbitrary"),
            vmem_limit_bytes=48 * 1024 * 1024,
        ),
    )(y2, z2, a2, b2)

    return jnp.sum(py), jnp.sum(pz), jnp.sum(ps)


# ---------------------------------------------------------------------------
# RateDistortionLoss forward (JAX / Pallas)
# ---------------------------------------------------------------------------
def rate_distortion_loss(output, target, lmbda=0.01):
    """output = {'x_hat': NCHW, 'likelihoods': {'y': ..., 'z': ... (optional)}}"""
    N, _, H, W = target.shape
    num_pixels = N * H * W
    denom = -math.log(2.0) * num_pixels

    likelihoods = output['likelihoods']
    has_z = 'z' in likelihoods

    y_main, y_tail = _prep(likelihoods['y'], neutral=1.0)
    if has_z:
        z_main, z_tail = _prep(likelihoods['z'], neutral=1.0)
    else:
        z_main, z_tail = jnp.ones((8, LANE), jnp.float32), None
    a_main, a_tail = _prep(output['x_hat'], neutral=0.0)
    b_main, b_tail = _prep(target, neutral=0.0)

    y_sum, z_sum, sse_sum = _fused_reduce(y_main, z_main, a_main, b_main)

    # Ragged lane-tails (< 128 elements each), finished in plain JAX.
    if y_tail is not None:
        y_sum = y_sum + jnp.sum(jnp.log(y_tail.astype(jnp.float32)))
    if has_z and z_tail is not None:
        z_sum = z_sum + jnp.sum(jnp.log(z_tail.astype(jnp.float32)))
    if a_tail is not None:
        dt = a_tail.astype(jnp.float32) - b_tail.astype(jnp.float32)
        sse_sum = sse_sum + jnp.sum(dt * dt)

    y_bpp = y_sum / denom
    z_bpp = z_sum / denom if has_z else jnp.float32(0.0)

    extra_bpp = 0.0
    for k, v in likelihoods.items():
        if k not in ('y', 'z'):
            # TODO(synk): extra likelihood tensors reduced in plain JAX, not fused into the Pallas kernel.
            extra_bpp = extra_bpp + jnp.sum(jnp.log(v.astype(jnp.float32))) / denom
    bpp_loss = y_bpp + z_bpp + extra_bpp

    total_elems = 1
    for d in target.shape:
        total_elems *= d
    mse_loss = sse_sum / jnp.float32(total_elems)

    out = {}
    out['bpp_loss'] = bpp_loss
    out['y_bpp'] = y_bpp
    out['z_bpp'] = z_bpp
    out['mse_loss'] = mse_loss
    out['loss'] = lmbda * (255.0 ** 2) * mse_loss + bpp_loss
    out['psnr'] = 10.0 * (jnp.log(1.0 / mse_loss) / math.log(10.0))
    return out


# ---------------------------------------------------------------------------
# Example run
# ---------------------------------------------------------------------------
if __name__ == "__main__":
    key = jax.random.PRNGKey(0)
    k1, k2, k3, k4 = jax.random.split(key, 4)

    N, C, H, W = 2, 3, 16, 16
    target = jax.random.uniform(k1, (N, C, H, W), dtype=jnp.float32)
    x_hat = jnp.clip(
        target + 0.05 * jax.random.normal(k2, (N, C, H, W), dtype=jnp.float32),
        0.0, 1.0)

    # likelihoods in (0, 1] (typical compressai-style latent / hyperprior shapes)
    lik_y = jax.random.uniform(k3, (N, 8, 8, 8), dtype=jnp.float32,
                               minval=1e-4, maxval=1.0)
    lik_z = jax.random.uniform(k4, (N, 4, 4, 4), dtype=jnp.float32,
                               minval=1e-4, maxval=1.0)

    output = {'x_hat': x_hat, 'likelihoods': {'y': lik_y, 'z': lik_z}}

    result = rate_distortion_loss(output, target, lmbda=0.01)
    result = jax.tree_util.tree_map(jax.block_until_ready, result)

    # Lightweight self-check against plain JAX (no extra prints on success).
    ref_mse = jnp.mean((x_hat - target) ** 2)
    ref_bpp = (jnp.sum(jnp.log(lik_y)) + jnp.sum(jnp.log(lik_z))) / (
        -math.log(2.0) * (N * H * W))
    ref_loss = 0.01 * (255.0 ** 2) * ref_mse + ref_bpp
    ok = (jnp.allclose(result['mse_loss'], ref_mse, rtol=1e-5, atol=1e-6)
          & jnp.allclose(result['bpp_loss'], ref_bpp, rtol=1e-5, atol=1e-6)
          & jnp.allclose(result['loss'], ref_loss, rtol=1e-5, atol=1e-6))
    if not bool(ok):
        raise SystemExit("mismatch vs plain-JAX reference")

    print("KERNEL_OK")
</pallas_src>

<mosaic_0001>
module attributes {stable_mosaic.version = 11 : i64} {
  func.func @kernel(%arg0: i32, %arg1: i32, %arg2: memref<8x128xf32, #tpu.memory_space<vmem>>, %arg3: memref<1x128xf32, #tpu.memory_space<vmem>>, %arg4: memref<12x128xf32, #tpu.memory_space<vmem>>, %arg5: memref<12x128xf32, #tpu.memory_space<vmem>>, %arg6: memref<1x1x1xf32, #tpu.memory_space<vmem>>, %arg7: memref<1x1x1xf32, #tpu.memory_space<vmem>>, %arg8: memref<1x1x1xf32, #tpu.memory_space<vmem>>, %arg9: memref<1x128xf32, #tpu.memory_space<vmem>>, %arg10: memref<1x128xf32, #tpu.memory_space<vmem>>, %arg11: memref<1x128xf32, #tpu.memory_space<vmem>>) attributes {dimension_semantics = [#tpu.dimension_semantics<parallel>, #tpu.dimension_semantics<arbitrary>], iteration_bounds = array<i64: 2, 1>, scalar_prefetch = 0 : i64, scratch_operands = 3 : i64, tpu.core_type = #tpu.core_type<tc>, window_params = [{transform_indices = @transform_0, window_bounds = array<i64: 8, 128>}, {transform_indices = @transform_1, window_bounds = array<i64: 1, 128>}, {transform_indices = @transform_2, window_bounds = array<i64: 12, 128>}, {transform_indices = @transform_3, window_bounds = array<i64: 12, 128>}, {transform_indices = @transform_4, window_bounds = array<i64: 1, 1, 1>}, {transform_indices = @transform_5, window_bounds = array<i64: 1, 1, 1>}, {transform_indices = @transform_6, window_bounds = array<i64: 1, 1, 1>}]} {
    %c1_i32 = arith.constant 1 : i32
    %0 = arith.muli %arg0, %c1_i32 : i32
    %1 = arith.addi %0, %arg1 : i32
    %c0_i32 = arith.constant 0 : i32
    %2 = arith.cmpi eq, %arg1, %c0_i32 : i32
    %3 = arith.extui %2 : i1 to i32
    %c0_i32_0 = arith.constant 0 : i32
    %4 = arith.cmpi ne, %3, %c0_i32_0 : i32
    scf.if %4 {
      %cst = arith.constant 0.000000e+00 : f32
      %17 = vector.broadcast %cst : f32 to vector<1x128xf32>
      %c0 = arith.constant 0 : index
      %c0_9 = arith.constant 0 : index
      %18 = vector.load %arg9[%c0, %c0_9] : memref<1x128xf32, #tpu.memory_space<vmem>>, vector<1x128xf32>
      tpu.vector_store %arg9[%c0, %c0_9], %17 {strides = array<i32>} : memref<1x128xf32, #tpu.memory_space<vmem>>, vector<1x128xf32>,
      %cst_10 = arith.constant 0.000000e+00 : f32
      %19 = vector.broadcast %cst_10 : f32 to vector<1x128xf32>
      %c0_11 = arith.constant 0 : index
      %c0_12 = arith.constant 0 : index
      %20 = vector.load %arg10[%c0_11, %c0_12] : memref<1x128xf32, #tpu.memory_space<vmem>>, vector<1x128xf32>
      tpu.vector_store %arg10[%c0_11, %c0_12], %19 {strides = array<i32>} : memref<1x128xf32, #tpu.memory_space<vmem>>, vector<1x128xf32>,
      %cst_13 = arith.constant 0.000000e+00 : f32
      %21 = vector.broadcast %cst_13 : f32 to vector<1x128xf32>
      %c0_14 = arith.constant 0 : index
      %c0_15 = arith.constant 0 : index
      %22 = vector.load %arg11[%c0_14, %c0_15] : memref<1x128xf32, #tpu.memory_space<vmem>>, vector<1x128xf32>
      tpu.vector_store %arg11[%c0_14, %c0_15], %21 {strides = array<i32>} : memref<1x128xf32, #tpu.memory_space<vmem>>, vector<1x128xf32>,
    } else {
    }
    %c1_i32_1 = arith.constant 1 : i32
    %5 = arith.cmpi slt, %1, %c1_i32_1 : i32
    %6 = arith.extui %5 : i1 to i32
    %c0_i32_2 = arith.constant 0 : i32
    %7 = arith.cmpi ne, %6, %c0_i32_2 : i32
    scf.if %7 {
      %c0 = arith.constant 0 : index
      %c0_9 = arith.constant 0 : index
      %17 = vector.load %arg2[%c0, %c0_9] : memref<8x128xf32, #tpu.memory_space<vmem>>, vector<8x128xf32>
      %c0_10 = arith.constant 0 : index
      %c0_11 = arith.constant 0 : index
      %18 = vector.load %arg9[%c0_10, %c0_11] : memref<1x128xf32, #tpu.memory_space<vmem>>, vector<1x128xf32>
      %19 = math.log %17 : vector<8x128xf32>
      %cst = arith.constant dense<0.000000e+00> : vector<128xf32>
      %20 = vector.multi_reduction <add>, %19, %cst [0] : vector<8x128xf32> to vector<128xf32>
      %21 = vector.shape_cast %20 : vector<128xf32> to vector<1x128xf32>
      %22 = arith.addf %18, %21 : vector<1x128xf32>
      %c0_12 = arith.constant 0 : index
      %c0_13 = arith.constant 0 : index
      %23 = vector.load %arg9[%c0_12, %c0_13] : memref<1x128xf32, #tpu.memory_space<vmem>>, vector<1x128xf32>
      tpu.vector_store %arg9[%c0_12, %c0_13], %22 {strides = array<i32>} : memref<1x128xf32, #tpu.memory_space<vmem>>, vector<1x128xf32>,
    } else {
    }
    %c1_i32_3 = arith.constant 1 : i32
    %8 = arith.cmpi slt, %1, %c1_i32_3 : i32
    %9 = arith.extui %8 : i1 to i32
    %c0_i32_4 = arith.constant 0 : i32
    %10 = arith.cmpi ne, %9, %c0_i32_4 : i32
    scf.if %10 {
      %c0 = arith.constant 0 : index
      %c0_9 = arith.constant 0 : index
      %17 = vector.load %arg3[%c0, %c0_9] : memref<1x128xf32, #tpu.memory_space<vmem>>, vector<1x128xf32>
      %c0_10 = arith.constant 0 : index
      %c0_11 = arith.constant 0 : index
      %18 = vector.load %arg10[%c0_10, %c0_11] : memref<1x128xf32, #tpu.memory_space<vmem>>, vector<1x128xf32>
      %19 = math.log %17 : vector<1x128xf32>
      %cst = arith.constant dense<0.000000e+00> : vector<128xf32>
      %20 = vector.multi_reduction <add>, %19, %cst [0] : vector<1x128xf32> to vector<128xf32>
      %21 = vector.shape_cast %20 : vector<128xf32> to vector<1x128xf32>
      %22 = arith.addf %18, %21 : vector<1x128xf32>
      %c0_12 = arith.constant 0 : index
      %c0_13 = arith.constant 0 : index
      %23 = vector.load %arg10[%c0_12, %c0_13] : memref<1x128xf32, #tpu.memory_space<vmem>>, vector<1x128xf32>
      tpu.vector_store %arg10[%c0_12, %c0_13], %22 {strides = array<i32>} : memref<1x128xf32, #tpu.memory_space<vmem>>, vector<1x128xf32>,
    } else {
    }
    %c1_i32_5 = arith.constant 1 : i32
    %11 = arith.cmpi slt, %1, %c1_i32_5 : i32
    %12 = arith.extui %11 : i1 to i32
    %c0_i32_6 = arith.constant 0 : i32
    %13 = arith.cmpi ne, %12, %c0_i32_6 : i32
    scf.if %13 {
      %c0 = arith.constant 0 : index
      %c0_9 = arith.constant 0 : index
      %17 = vector.load %arg4[%c0, %c0_9] : memref<12x128xf32, #tpu.memory_space<vmem>>, vector<12x128xf32>
      %c0_10 = arith.constant 0 : index
      %c0_11 = arith.constant 0 : index
      %18 = vector.load %arg5[%c0_10, %c0_11] : memref<12x128xf32, #tpu.memory_space<vmem>>, vector<12x128xf32>
      %19 = arith.subf %17, %18 : vector<12x128xf32>
      %c0_12 = arith.constant 0 : index
      %c0_13 = arith.constant 0 : index
      %20 = vector.load %arg11[%c0_12, %c0_13] : memref<1x128xf32, #tpu.memory_space<vmem>>, vector<1x128xf32>
      %21 = arith.mulf %19, %19 : vector<12x128xf32>
      %cst = arith.constant dense<0.000000e+00> : vector<128xf32>
      %22 = vector.multi_reduction <add>, %21, %cst [0] : vector<12x128xf32> to vector<128xf32>
      %23 = vector.shape_cast %22 : vector<128xf32> to vector<1x128xf32>
      %24 = arith.addf %20, %23 : vector<1x128xf32>
      %c0_14 = arith.constant 0 : index
      %c0_15 = arith.constant 0 : index
      %25 = vector.load %arg11[%c0_14, %c0_15] : memref<1x128xf32, #tpu.memory_space<vmem>>, vector<1x128xf32>
      tpu.vector_store %arg11[%c0_14, %c0_15], %24 {strides = array<i32>} : memref<1x128xf32, #tpu.memory_space<vmem>>, vector<1x128xf32>,
    } else {
    }
    %c0_i32_7 = arith.constant 0 : i32
    %14 = arith.cmpi eq, %arg1, %c0_i32_7 : i32
    %15 = arith.extui %14 : i1 to i32
    %c0_i32_8 = arith.constant 0 : i32
    %16 = arith.cmpi ne, %15, %c0_i32_8 : i32
    scf.if %16 {
      %c0 = arith.constant 0 : index
      %c0_9 = arith.constant 0 : index
      %17 = vector.load %arg9[%c0, %c0_9] : memref<1x128xf32, #tpu.memory_space<vmem>>, vector<1x128xf32>
      %18 = vector.shape_cast %17 : vector<1x128xf32> to vector<1x1x128xf32>
      %cst = arith.constant dense<0.000000e+00> : vector<1xf32>
      %19 = vector.multi_reduction <add>, %18, %cst [1, 2] : vector<1x1x128xf32> to vector<1xf32>
      %20 = vector.shape_cast %19 : vector<1xf32> to vector<1x1x1xf32>
      %21 = vector.extract %20[0, 0, 0] : f32 from vector<1x1x1xf32>
      %22 = vector.broadcast %21 : f32 to vector<1x1x1xf32>
      %c0_10 = arith.constant 0 : index
      %c0_11 = arith.constant 0 : index
      %c0_12 = arith.constant 0 : index
      %23 = vector.load %arg6[%c0_10, %c0_11, %c0_12] : memref<1x1x1xf32, #tpu.memory_space<vmem>>, vector<1x1x1xf32>
      tpu.vector_store %arg6[%c0_10, %c0_11, %c0_12], %22 {strides = array<i32>} : memref<1x1x1xf32, #tpu.memory_space<vmem>>, vector<1x1x1xf32>,
      %c0_13 = arith.constant 0 : index
      %c0_14 = arith.constant 0 : index
      %24 = vector.load %arg10[%c0_13, %c0_14] : memref<1x128xf32, #tpu.memory_space<vmem>>, vector<1x128xf32>
      %25 = vector.shape_cast %24 : vector<1x128xf32> to vector<1x1x128xf32>
      %cst_15 = arith.constant dense<0.000000e+00> : vector<1xf32>
      %26 = vector.multi_reduction <add>, %25, %cst_15 [1, 2] : vector<1x1x128xf32> to vector<1xf32>
      %27 = vector.shape_cast %26 : vector<1xf32> to vector<1x1x1xf32>
      %28 = vector.extract %27[0, 0, 0] : f32 from vector<1x1x1xf32>
      %29 = vector.broadcast %28 : f32 to vector<1x1x1xf32>
      %c0_16 = arith.constant 0 : index
      %c0_17 = arith.constant 0 : index
      %c0_18 = arith.constant 0 : index
      %30 = vector.load %arg7[%c0_16, %c0_17, %c0_18] : memref<1x1x1xf32, #tpu.memory_space<vmem>>, vector<1x1x1xf32>
      tpu.vector_store %arg7[%c0_16, %c0_17, %c0_18], %29 {strides = array<i32>} : memref<1x1x1xf32, #tpu.memory_space<vmem>>, vector<1x1x1xf32>,
      %c0_19 = arith.constant 0 : index
      %c0_20 = arith.constant 0 : index
      %31 = vector.load %arg11[%c0_19, %c0_20] : memref<1x128xf32, #tpu.memory_space<vmem>>, vector<1x128xf32>
      %32 = vector.shape_cast %31 : vector<1x128xf32> to vector<1x1x128xf32>
      %cst_21 = arith.constant dense<0.000000e+00> : vector<1xf32>
      %33 = vector.multi_reduction <add>, %32, %cst_21 [1, 2] : vector<1x1x128xf32> to vector<1xf32>
      %34 = vector.shape_cast %33 : vector<1xf32> to vector<1x1x1xf32>
      %35 = vector.extract %34[0, 0, 0] : f32 from vector<1x1x1xf32>
      %36 = vector.broadcast %35 : f32 to vector<1x1x1xf32>
      %c0_22 = arith.constant 0 : index
      %c0_23 = arith.constant 0 : index
      %c0_24 = arith.constant 0 : index
      %37 = vector.load %arg8[%c0_22, %c0_23, %c0_24] : memref<1x1x1xf32, #tpu.memory_space<vmem>>, vector<1x1x1xf32>
      tpu.vector_store %arg8[%c0_22, %c0_23, %c0_24], %36 {strides = array<i32>} : memref<1x1x1xf32, #tpu.memory_space<vmem>>, vector<1x1x1xf32>,
    } else {
    }
    return
  }
  func.func @transform_0(%arg0: i32, %arg1: i32) -> (i32, i32) {
    %c1_i32 = arith.constant 1 : i32
    %0 = arith.muli %arg0, %c1_i32 : i32
    %1 = arith.addi %0, %arg1 : i32
    %c0_i32 = arith.constant 0 : i32
    %2 = arith.minsi %1, %c0_i32 : i32
    %c0_i32_0 = arith.constant 0 : i32
    %c0_i32_1 = arith.constant 0 : i32
    return %2, %c0_i32_0 : i32, i32
  }
  func.func @transform_1(%arg0: i32, %arg1: i32) -> (i32, i32) {
    %c1_i32 = arith.constant 1 : i32
    %0 = arith.muli %arg0, %c1_i32 : i32
    %1 = arith.addi %0, %arg1 : i32
    %c0_i32 = arith.constant 0 : i32
    %2 = arith.minsi %1, %c0_i32 : i32
    %c0_i32_0 = arith.constant 0 : i32
    %c0_i32_1 = arith.constant 0 : i32
    return %2, %c0_i32_0 : i32, i32
  }
  func.func @transform_2(%arg0: i32, %arg1: i32) -> (i32, i32) {
    %c1_i32 = arith.constant 1 : i32
    %0 = arith.muli %arg0, %c1_i32 : i32
    %1 = arith.addi %0, %arg1 : i32
    %c0_i32 = arith.constant 0 : i32
    %2 = arith.minsi %1, %c0_i32 : i32
    %c0_i32_0 = arith.constant 0 : i32
    %c0_i32_1 = arith.constant 0 : i32
    return %2, %c0_i32_0 : i32, i32
  }
  func.func @transform_3(%arg0: i32, %arg1: i32) -> (i32, i32) {
    %c1_i32 = arith.constant 1 : i32
    %0 = arith.muli %arg0, %c1_i32 : i32
    %1 = arith.addi %0, %arg1 : i32
    %c0_i32 = arith.constant 0 : i32
    %2 = arith.minsi %1, %c0_i32 : i32
    %c0_i32_0 = arith.constant 0 : i32
    %c0_i32_1 = arith.constant 0 : i32
    return %2, %c0_i32_0 : i32, i32
  }
  func.func @transform_4(%arg0: i32, %arg1: i32) -> (i32, i32, i32) {
    %c0_i32 = arith.constant 0 : i32
    %c0_i32_0 = arith.constant 0 : i32
    %c0_i32_1 = arith.constant 0 : i32
    return %arg0, %c0_i32, %c0_i32_0 : i32, i32, i32
  }
  func.func @transform_5(%arg0: i32, %arg1: i32) -> (i32, i32, i32) {
    %c0_i32 = arith.constant 0 : i32
    %c0_i32_0 = arith.constant 0 : i32
    %c0_i32_1 = arith.constant 0 : i32
    return %arg0, %c0_i32, %c0_i32_0 : i32, i32, i32
  }
  func.func @transform_6(%arg0: i32, %arg1: i32) -> (i32, i32, i32) {
    %c0_i32 = arith.constant 0 : i32
    %c0_i32_0 = arith.constant 0 : i32
    %c0_i32_1 = arith.constant 0 : i32
    return %arg0, %c0_i32, %c0_i32_0 : i32, i32, i32
  }
}

</mosaic_0001>

<llo_original>
// kernel: tpu_custom_call.1
$region0: #{tpu_custom_call.1}
  #allocation0 [shape = 'u32[]', space=smem, size = 0x4, offset = 0x4, fixed_abs, tag = 'smem constant byte address 0x4 - core index']
  #allocation1 [shape = 'u32[144,128]{1,0:T(1,128)}', space=vmem, size = 0x12000, scoped, tag = 'internal scratch']
  #allocation2 [shape = 'f32[1,128]{1,0:T(1,128)}', space=vmem, size = 0x200, scoped, tag = 'scratch operand']
  #allocation3 [shape = 'f32[1,128]{1,0:T(1,128)}', space=vmem, size = 0x200, scoped, tag = 'scratch operand']
  #allocation4 [shape = 'f32[1,128]{1,0:T(1,128)}', space=vmem, size = 0x200, scoped, tag = 'scratch operand']
  %s0 = inlined_call_operand.hbm [shape: f32[8,128], index: 0, kind: input, shape index: {}]
  %s1 = inlined_call_operand.vmem [shape: f32[1,128], index: 1, kind: input, shape index: {}]
  %s2 = inlined_call_operand.hbm [shape: f32[12,128], index: 2, kind: input, shape index: {}]
  %s3 = inlined_call_operand.hbm [shape: f32[12,128], index: 3, kind: input, shape index: {}]
  %s4 = inlined_call_operand.vmem [shape: f32[2,1,1], index: 4, kind: output, shape index: {0}]
  %s5 = inlined_call_operand.vmem [shape: f32[2,1,1], index: 5, kind: output, shape index: {1}]
  %s6 = inlined_call_operand.vmem [shape: f32[2,1,1], index: 6, kind: output, shape index: {2}]
  %7 = xla_tuple %s4, %s5, %s6
  %s8 = sld [smem:[#allocation0]]
  $region89: #{tpu_custom_call.1} parent=0
    _
  %s10 = ssub.s32 1, %s8
  %s11 = scalar_select 0, %s10, %s8
  $region1: #{tpu_custom_call.1} parent=0
    #allocation5 [shape = 'u8[8192]{0}', space=vmem, size = 0x2000, scoped, tag = 'input window, operand 0']
    #allocation6 [shape = 's32[2]{0}', space=sflag, size = 0x8, scoped, tag = 'scoped memory for tpu_custom_call.1']
    #allocation7 [shape = 'u8[16384]{0}', space=vmem, size = 0x4000, scoped, tag = 'input window, operand 2']
    #allocation8 [shape = 's32[2]{0}', space=sflag, size = 0x8, scoped, tag = 'scoped memory for tpu_custom_call.1']
    #allocation9 [shape = 'u8[16384]{0}', space=vmem, size = 0x4000, scoped, tag = 'input window, operand 3']
    %12 = vsyncpa [#allocation6], 0
    %s13 = scalar_lea.sflag [#allocation6], 1
    %14 = vsyncpa %s13, 0
    %15 = vsyncpa [#allocation8], 0
    %s16 = scalar_lea.sflag [#allocation8], 1
    %17 = vsyncpa %s16, 0
    loop: start=0, step=1, limit=4
    $region2: #{tpu_custom_call.1} parent=1 // loop_pre_header
      _
    $region3: #{tpu_custom_call.1} parent=1 // loop_header
      %s19 = sphi 0, %s23
      %p20 = scmp.ge.s32.totalorder %s19, 4
      %s26 = sphi 0, %s38
      %s27 = sphi 0, %s34
      %s28 = sphi 0, %s26
      %s29 = sphi 0, %s27
      %s30 = sphi 0, %s28
      %s31 = sphi 0, %s29
      %s47 = sphi 0, %s49
      %s50 = sphi 0, %s47
      %s51 = sphi 0, %s50
      %s67 = sphi 0, %s51
      %s79 = sphi 0, %s81
      %s82 = sphi 0, %s79
      %s83 = sphi 0, %s82
      %s99 = sphi 0, %s83
      %s111 = sphi 0, %s113
      %s114 = sphi 0, %s111
      %s115 = sphi 0, %s114
      %s131 = sphi 0, %s115
      %s143 = sphi 0, %s145
      %s146 = sphi 0, %s143
      %s147 = sphi 0, %s146
      %s163 = sphi 0, %s147
      %s169 = sphi 0, %s171
      %s172 = sphi 0, %s169
      %s173 = sphi 0, %s172
      %s189 = sphi 0, %s173
      %s195 = sphi 0, %s197
      %s198 = sphi 0, %s195
      %s199 = sphi 0, %s198
      %s215 = sphi 0, %s199
      %s221 = sphi 0, %s223
      %s224 = sphi 0, %s221
      %s225 = sphi 0, %s224
      %s241 = sphi 0, %s225
    $region4: #{tpu_custom_call.1} parent=1 // loop_header_branch
      %22 = sbr.rel (%p20) target = $region8
    $region5: #{tpu_custom_call.1} parent=1 // loop_body
      %s24 = ssub.s32 %s19, 1
      %s25 = ssub.s32 %s19, 2
      %s32 = sadd.s32 1, %s27
      %p33 = scmp.ge.s32.totalorder %s32, 1
      %s34 = scalar_select %p33, 0, %s32
      %s35 = sadd.s32 1, %s26
      %s36 = scalar_select %p33, %s35, %s26
      %p37 = scmp.ge.s32.totalorder %s36, 2
      %s38 = scalar_select %p37, 0, %s36
      %s39 = sadd.s32 %s26, %s27
      %p40 = scmp.lt.s32.totalorder %s39, 0
      %s41 = scalar_select %p40, %s39, 0
      %s42 = sadd.s32 %s38, %s34
      %p43 = scmp.lt.s32.totalorder %s42, 0
      %s44 = scalar_select %p43, %s42, 0
      %s45 = ssub.s32 %s41, %s44
      %p46 = scmp.eq.s32.totalorder %s45, 0
      %s48 = sadd.s32 %s47, 1
      %s49 = scalar_select %p46, %s47, %s48
      %p52 = pneg %p46
      %p53 = scmp.eq.s32.totalorder %s19, 1
      %p54 = por %p52, %p53
      %p55 = scmp.ne.s32.totalorder %s47, %s50
      %p56 = scmp.eq.s32.totalorder %s19, 0
      %p57 = por %p55, %p56
      %p58 = scmp.ne.s32.totalorder %s47, %s50
      %p59 = scmp.eq.s32.totalorder %s24, 1
      %p60 = por %p58, %p59
      %p61 = scmp.ne.s32.totalorder %s50, %s51
      %p62 = scmp.eq.s32.totalorder %s24, 0
      %p63 = por %p61, %p62
      %p64 = scmp.ne.s32.totalorder %s50, %s51
      %p65 = scmp.eq.s32.totalorder %s25, 1
      %p66 = por %p64, %p65
      %p68 = scmp.ne.s32.totalorder %s51, %s67
      %p69 = scmp.eq.s32.totalorder %s25, 0
      %p70 = por %p68, %p69
      %s71 = sadd.s32 %s26, %s27
      %p72 = scmp.lt.s32.totalorder %s71, 0
      %s73 = scalar_select %p72, %s71, 0
      %s74 = sadd.s32 %s38, %s34
      %p75 = scmp.lt.s32.totalorder %s74, 0
      %s76 = scalar_select %p75, %s74, 0
      %s77 = ssub.s32 %s73, %s76
      %p78 = scmp.eq.s32.totalorder %s77, 0
      %s80 = sadd.s32 %s79, 1
      %s81 = scalar_select %p78, %s79, %s80
      %p84 = pneg %p78
      %p85 = scmp.eq.s32.totalorder %s19, 1
      %p86 = por %p84, %p85
      %p87 = scmp.ne.s32.totalorder %s79, %s82
      %p88 = scmp.eq.s32.totalorder %s19, 0
      %p89 = por %p87, %p88
      %p90 = scmp.ne.s32.totalorder %s79, %s82
      %p91 = scmp.eq.s32.totalorder %s24, 1
      %p92 = por %p90, %p91
      %p93 = scmp.ne.s32.totalorder %s82, %s83
      %p94 = scmp.eq.s32.totalorder %s24, 0
      %p95 = por %p93, %p94
      %p96 = scmp.ne.s32.totalorder %s82, %s83
      %p97 = scmp.eq.s32.totalorder %s25, 1
      %p98 = por %p96, %p97
      %p100 = scmp.ne.s32.totalorder %s83, %s99
      %p101 = scmp.eq.s32.totalorder %s25, 0
      %p102 = por %p100, %p101
      %s103 = sadd.s32 %s26, %s27
      %p104 = scmp.lt.s32.totalorder %s103, 0
      %s105 = scalar_select %p104, %s103, 0
      %s106 = sadd.s32 %s38, %s34
      %p107 = scmp.lt.s32.totalorder %s106, 0
      %s108 = scalar_select %p107, %s106, 0
      %s109 = ssub.s32 %s105, %s108
      %p110 = scmp.eq.s32.totalorder %s109, 0
      %s112 = sadd.s32 %s111, 1
      %s113 = scalar_select %p110, %s111, %s112
      %p116 = pneg %p110
      %p117 = scmp.eq.s32.totalorder %s19, 1
      %p118 = por %p116, %p117
      %p119 = scmp.ne.s32.totalorder %s111, %s114
      %p120 = scmp.eq.s32.totalorder %s19, 0
      %p121 = por %p119, %p120
      %p122 = scmp.ne.s32.totalorder %s111, %s114
      %p123 = scmp.eq.s32.totalorder %s24, 1
      %p124 = por %p122, %p123
      %p125 = scmp.ne.s32.totalorder %s114, %s115
      %p126 = scmp.eq.s32.totalorder %s24, 0
      %p127 = por %p125, %p126
      %p128 = scmp.ne.s32.totalorder %s114, %s115
      %p129 = scmp.eq.s32.totalorder %s25, 1
      %p130 = por %p128, %p129
      %p132 = scmp.ne.s32.totalorder %s115, %s131
      %p133 = scmp.eq.s32.totalorder %s25, 0
      %p134 = por %p132, %p133
      %s135 = sadd.s32 %s26, %s27
      %p136 = scmp.lt.s32.totalorder %s135, 0
      %s137 = scalar_select %p136, %s135, 0
      %s138 = sadd.s32 %s38, %s34
      %p139 = scmp.lt.s32.totalorder %s138, 0
      %s140 = scalar_select %p139, %s138, 0
      %s141 = ssub.s32 %s137, %s140
      %p142 = scmp.eq.s32.totalorder %s141, 0
      %s144 = sadd.s32 %s143, 1
      %s145 = scalar_select %p142, %s143, %s144
      %p148 = pneg %p142
      %p149 = scmp.eq.s32.totalorder %s19, 1
      %p150 = por %p148, %p149
      %p151 = scmp.ne.s32.totalorder %s143, %s146
      %p152 = scmp.eq.s32.totalorder %s19, 0
      %p153 = por %p151, %p152
      %p154 = scmp.ne.s32.totalorder %s143, %s146
      %p155 = scmp.eq.s32.totalorder %s24, 1
      %p156 = por %p154, %p155
      %p157 = scmp.ne.s32.totalorder %s146, %s147
      %p158 = scmp.eq.s32.totalorder %s24, 0
      %p159 = por %p157, %p158
      %p160 = scmp.ne.s32.totalorder %s146, %s147
      %p161 = scmp.eq.s32.totalorder %s25, 1
      %p162 = por %p160, %p161
      %p164 = scmp.ne.s32.totalorder %s147, %s163
      %p165 = scmp.eq.s32.totalorder %s25, 0
      %p166 = por %p164, %p165
      %s167 = ssub.s32 %s26, %s38
      %p168 = scmp.eq.s32.totalorder %s167, 0
      %s170 = sadd.s32 %s169, 1
      %s171 = scalar_select %p168, %s169, %s170
      %p174 = pneg %p168
      %p175 = scmp.eq.s32.totalorder %s19, 1
      %p176 = por %p174, %p175
      %p177 = scmp.ne.s32.totalorder %s169, %s172
      %p178 = scmp.eq.s32.totalorder %s19, 0
      %p179 = por %p177, %p178
      %p180 = scmp.ne.s32.totalorder %s169, %s172
      %p181 = scmp.eq.s32.totalorder %s24, 1
      %p182 = por %p180, %p181
      %p183 = scmp.ne.s32.totalorder %s172, %s173
      %p184 = scmp.eq.s32.totalorder %s24, 0
      %p185 = por %p183, %p184
      %p186 = scmp.ne.s32.totalorder %s172, %s173
      %p187 = scmp.eq.s32.totalorder %s25, 1
      %p188 = por %p186, %p187
      %p190 = scmp.ne.s32.totalorder %s173, %s189
      %p191 = scmp.eq.s32.totalorder %s25, 0
      %p192 = por %p190, %p191
      %s193 = ssub.s32 %s26, %s38
      %p194 = scmp.eq.s32.totalorder %s193, 0
      %s196 = sadd.s32 %s195, 1
      %s197 = scalar_select %p194, %s195, %s196
      %p200 = pneg %p194
      %p201 = scmp.eq.s32.totalorder %s19, 1
      %p202 = por %p200, %p201
      %p203 = scmp.ne.s32.totalorder %s195, %s198
      %p204 = scmp.eq.s32.totalorder %s19, 0
      %p205 = por %p203, %p204
      %p206 = scmp.ne.s32.totalorder %s195, %s198
      %p207 = scmp.eq.s32.totalorder %s24, 1
      %p208 = por %p206, %p207
      %p209 = scmp.ne.s32.totalorder %s198, %s199
      %p210 = scmp.eq.s32.totalorder %s24, 0
      %p211 = por %p209, %p210
      %p212 = scmp.ne.s32.totalorder %s198, %s199
      %p213 = scmp.eq.s32.totalorder %s25, 1
      %p214 = por %p212, %p213
      %p216 = scmp.ne.s32.totalorder %s199, %s215
      %p217 = scmp.eq.s32.totalorder %s25, 0
      %p218 = por %p216, %p217
      %s219 = ssub.s32 %s26, %s38
      %p220 = scmp.eq.s32.totalorder %s219, 0
      %s222 = sadd.s32 %s221, 1
      %s223 = scalar_select %p220, %s221, %s222
      %p226 = pneg %p220
      %p227 = scmp.eq.s32.totalorder %s19, 1
      %p228 = por %p226, %p227
      %p229 = scmp.ne.s32.totalorder %s221, %s224
      %p230 = scmp.eq.s32.totalorder %s19, 0
      %p231 = por %p229, %p230
      %p232 = scmp.ne.s32.totalorder %s221, %s224
      %p233 = scmp.eq.s32.totalorder %s24, 1
      %p234 = por %p232, %p233
      %p235 = scmp.ne.s32.totalorder %s224, %s225
      %p236 = scmp.eq.s32.totalorder %s24, 0
      %p237 = por %p235, %p236
      %p238 = scmp.ne.s32.totalorder %s224, %s225
      %p239 = scmp.eq.s32.totalorder %s25, 1
      %p240 = por %p238, %p239
      %p242 = scmp.ne.s32.totalorder %s225, %s241
      %p243 = scmp.eq.s32.totalorder %s25, 0
      %p244 = por %p242, %p243
      %p245 = scmp.le.s32.totalorder 1, %s19
      %p246 = scmp.lt.s32.totalorder %s19, 3
      %p247 = pnand %p245, %p246
      %p248 = pneg %p247
      // Predicated region
      $region9: #{tpu_custom_call.1} parent=5 // pred_check
        _
      $region10: #{tpu_custom_call.1} parent=5 // pred_check_branch
        %250 = sbr.rel (%p247) target = $region12
      $region11: #{tpu_custom_call.1} parent=5 // pred_region
        %s251 = ssub.s32 %s19, 1
      $region12: #{tpu_custom_call.1} parent=5 // pred_fallthru
        _
      %p252 = scmp.lt.s32.totalorder %s19, 2
      // Predicated region
      $region13: #{tpu_custom_call.1} parent=5 // pred_check
        %p253 = pneg %p252
      $region14: #{tpu_custom_call.1} parent=5 // pred_check_branch
        %255 = sbr.rel (%p253) target = $region16
      $region15: #{tpu_custom_call.1} parent=5 // pred_region
        // Predicated region
        $region17: #{tpu_custom_call.1} parent=15 // pred_check
          %p256 = pneg %p57
        $region18: #{tpu_custom_call.1} parent=15 // pred_check_branch
          %258 = sbr.rel (%p256) target = $region20
        $region19: #{tpu_custom_call.1} parent=15 // pred_region
          %s259 = sand.u32 %s47, 1
          %s260 = scalar_lea.sflag [#allocation6], %s259
          %s261 = sand.u32 %s47, 1
          %s262 = smul.addr %s261, 8
          %s263 = scalar_lea.vmem [#allocation5], %s262
          %s264 = sadd.s32 %s26, %s27
          %p265 = scmp.lt.s32.totalorder %s264, 0
          %s266 = scalar_select %p265, %s264, 0
          %s268 = ssub.s32 128, 128
          %269 = vsyncadd %s260, %s268
          %s270 = smul.addr %s266, 128
          %s271 = scalar_lea.hbm %s0, %s270
          %s273 = sshll.u32 %s263, 4
          %s274 = int_to_ptr.vmem [resolvable:$true] %s273
          %276 = dma.hbm_to_vmem [thread:$0]  %s271, 128, %s274, %s260
        $region20: #{tpu_custom_call.1} parent=15 // pred_fallthru
          _
        // Predicated region
        $region21: #{tpu_custom_call.1} parent=15 // pred_check
          %p277 = pneg %p89
        $region22: #{tpu_custom_call.1} parent=15 // pred_check_branch
          %279 = sbr.rel (%p277) target = $region24
        $region23: #{tpu_custom_call.1} parent=15 // pred_region
          %s280 = sadd.s32 %s26, %s27
          %p281 = scmp.lt.s32.totalorder %s280, 0
          %s282 = scalar_select %p281, %s280, 0
          %p283 = scmp.lt.s32.totalorder %s282, 0
          %s284 = scalar_select %p283, %s282, 0
          %s285 = scalar_lea.vmem %s1, %s284
          %s286 = sadd.s32 %s26, %s27
          %p287 = scmp.lt.s32.totalorder %s286, 0
          %s288 = scalar_select %p287, %s286, 0
        $region24: #{tpu_custom_call.1} parent=15 // pred_fallthru
          _
        // Predicated region
        $region25: #{tpu_custom_call.1} parent=15 // pred_check
          %p289 = pneg %p121
        $region26: #{tpu_custom_call.1} parent=15 // pred_check_branch
          %291 = sbr.rel (%p289) target = $region28
        $region27: #{tpu_custom_call.1} parent=15 // pred_region
          %s292 = sand.u32 %s19, 1
          %s293 = scalar_lea.sflag [#allocation8], %s292
          %s294 = sand.u32 %s111, 1
          %s295 = smul.addr %s294, 16
          %s296 = scalar_lea.vmem [#allocation7], %s295
          %s297 = sadd.s32 %s26, %s27
          %p298 = scmp.lt.s32.totalorder %s297, 0
          %s299 = scalar_select %p298, %s297, 0
          %s300 = smul.u32 2, %s299
          %s302 = ssub.s32 256, 256
          %303 = vsyncadd %s293, %s302
          %s304 = smul.addr %s300, 128
          %s305 = scalar_lea.hbm %s2, %s304
          %s306 = sshll.u32 %s296, 4
          %s307 = int_to_ptr.vmem [resolvable:$true] %s306
          %312 = dma.hbm_to_vmem [thread:$0]  %s305, 256, %s307, %s293, 128, 128, 8
        $region28: #{tpu_custom_call.1} parent=15 // pred_fallthru
          _
        // Predicated region
        $region29: #{tpu_custom_call.1} parent=15 // pred_check
          %p313 = pneg %p153
        $region30: #{tpu_custom_call.1} parent=15 // pred_check_branch
          %315 = sbr.rel (%p313) target = $region32
        $region31: #{tpu_custom_call.1} parent=15 // pred_region
          %s316 = sand.u32 %s19, 1
          %s317 = scalar_lea.sflag [#allocation8], %s316
          %s318 = sand.u32 %s143, 1
          %s319 = smul.addr %s318, 16
          %s320 = scalar_lea.vmem [#allocation9], %s319
          %s321 = sadd.s32 %s26, %s27
          %p322 = scmp.lt.s32.totalorder %s321, 0
          %s323 = scalar_select %p322, %s321, 0
          %s324 = smul.u32 2, %s323
          %s326 = ssub.s32 256, 256
          %327 = vsyncadd %s317, %s326
          %s328 = smul.addr %s324, 128
          %s329 = scalar_lea.hbm %s3, %s328
          %s330 = sshll.u32 %s320, 4
          %s331 = int_to_ptr.vmem [resolvable:$true] %s330
          %336 = dma.hbm_to_vmem [thread:$0]  %s329, 256, %s331, %s317, 128, 128, 8
        $region32: #{tpu_custom_call.1} parent=15 // pred_fallthru
          _
      $region16: #{tpu_custom_call.1} parent=5 // pred_fallthru
        _
      %p337 = scmp.le.s32.totalorder 1, %s19
      %p338 = scmp.lt.s32.totalorder %s19, 3
      %p339 = pnand %p337, %p338
      %p340 = pneg %p339
      // Predicated region
      $region33: #{tpu_custom_call.1} parent=5 // pred_check
        _
      $region34: #{tpu_custom_call.1} parent=5 // pred_check_branch
        %342 = sbr.rel (%p339) target = $region36
      $region35: #{tpu_custom_call.1} parent=5 // pred_region
        %s343 = ssub.s32 %s19, 1
        %s344 = sand.u32 %s50, 1
        %s345 = scalar_lea.sflag [#allocation6], %s344
        %s346 = sand.u32 %s50, 1
        %s347 = smul.addr %s346, 8
        %s348 = scalar_lea.vmem [#allocation5], %s347
        // Predicated region
        $region37: #{tpu_custom_call.1} parent=35 // pred_check
          %p349 = pneg %p63
        $region38: #{tpu_custom_call.1} parent=35 // pred_check_branch
          %351 = sbr.rel (%p349) target = $region40
        $region39: #{tpu_custom_call.1} parent=35 // pred_region
          %352 = dma.done %s345, 128
        $region40: #{tpu_custom_call.1} parent=35 // pred_fallthru
          _
        %s353 = sand.u32 %s24, 1
        %s354 = scalar_lea.sflag [#allocation8], %s353
        %s355 = sand.u32 %s114, 1
        %s356 = smul.addr %s355, 16
        %s357 = scalar_lea.vmem [#allocation7], %s356
        // Predicated region
        $region41: #{tpu_custom_call.1} parent=35 // pred_check
          %p358 = pneg %p127
        $region42: #{tpu_custom_call.1} parent=35 // pred_check_branch
          %360 = sbr.rel (%p358) target = $region44
        $region43: #{tpu_custom_call.1} parent=35 // pred_region
          %361 = dma.done %s354, 256
        $region44: #{tpu_custom_call.1} parent=35 // pred_fallthru
          _
        %s362 = sand.u32 %s24, 1
        %s363 = scalar_lea.sflag [#allocation8], %s362
        %s364 = sand.u32 %s146, 1
        %s365 = smul.addr %s364, 16
        %s366 = scalar_lea.vmem [#allocation9], %s365
        // Predicated region
        $region45: #{tpu_custom_call.1} parent=35 // pred_check
          %p367 = pneg %p159
        $region46: #{tpu_custom_call.1} parent=35 // pred_check_branch
          %369 = sbr.rel (%p367) target = $region48
        $region47: #{tpu_custom_call.1} parent=35 // pred_region
          %370 = dma.done %s363, 256
        $region48: #{tpu_custom_call.1} parent=35 // pred_fallthru
          _
        %s371 = sand.u32 %s50, 1
        %s372 = scalar_lea.sflag [#allocation6], %s371
        %s373 = sand.u32 %s50, 1
        %s374 = smul.addr %s373, 8
        %s375 = scalar_lea.vmem [#allocation5], %s374
        %p376 = pneg %p63
        %p377 = pneg %p60
        %s378 = sadd.s32 %s28, %s29
        %p379 = scmp.lt.s32.totalorder %s378, 0
        %s380 = scalar_select %p379, %s378, 0
        %p381 = scmp.lt.s32.totalorder %s380, 0
        %s382 = scalar_select %p381, %s380, 0
        %s383 = scalar_lea.vmem %s1, %s382
        %p384 = pneg %p95
        %p385 = pneg %p92
        %s386 = sand.u32 %s24, 1
        %s387 = scalar_lea.sflag [#allocation8], %s386
        %s388 = sand.u32 %s114, 1
        %s389 = smul.addr %s388, 16
        %s390 = scalar_lea.vmem [#allocation7], %s389
        %p391 = pneg %p127
        %p392 = pneg %p124
        %s393 = sand.u32 %s24, 1
        %s394 = scalar_lea.sflag [#allocation8], %s393
        %s395 = sand.u32 %s146, 1
        %s396 = smul.addr %s395, 16
        %s397 = scalar_lea.vmem [#allocation9], %s396
        %p398 = pneg %p159
        %p399 = pneg %p156
        %p400 = pneg %p185
        %p401 = pneg %p182
        %p402 = scmp.lt.s32.totalorder %s28, 1
        %s403 = scalar_select %p402, %s28, 1
        %s404 = scalar_lea.vmem %s4, %s403
        %p405 = pneg %p211
        %p406 = pneg %p208
        %p407 = scmp.lt.s32.totalorder %s28, 1
        %s408 = scalar_select %p407, %s28, 1
        %s409 = scalar_lea.vmem %s5, %s408
        %p410 = pneg %p237
        %p411 = pneg %p234
        %p412 = scmp.lt.s32.totalorder %s28, 1
        %s413 = scalar_select %p412, %s28, 1
        %s414 = scalar_lea.vmem %s6, %s413
        %s415 = sadd.s32 %s28, %s29
        %p416 = scmp.lt.s32.totalorder %s415, 0
        %s417 = scalar_select %p416, %s415, 0
        %s418 = sadd.s32 %s28, %s29
        %p419 = scmp.lt.s32.totalorder %s418, 0
        %s420 = scalar_select %p419, %s418, 0
        %p421 = scmp.lt.s32.totalorder %s420, 0
        %s422 = scalar_select %p421, %s420, 0
        %s423 = scalar_lea.vmem %s1, %s422
        %s424 = sadd.s32 %s28, %s29
        %p425 = scmp.lt.s32.totalorder %s424, 0
        %s426 = scalar_select %p425, %s424, 0
        %s427 = sadd.s32 %s28, %s29
        %p428 = scmp.lt.s32.totalorder %s427, 0
        %s429 = scalar_select %p428, %s427, 0
        %s430 = smul.u32 2, %s429
        %s431 = sadd.s32 %s28, %s29
        %p432 = scmp.lt.s32.totalorder %s431, 0
        %s433 = scalar_select %p432, %s431, 0
        %s434 = smul.u32 2, %s433
        %p435 = scmp.lt.s32.totalorder %s28, 1
        %s436 = scalar_select %p435, %s28, 1
        %s437 = scalar_lea.vmem %s4, %s436
        %p438 = scmp.lt.s32.totalorder %s28, 1
        %s439 = scalar_select %p438, %s28, 1
        %s440 = scalar_lea.vmem %s5, %s439
        %p441 = scmp.lt.s32.totalorder %s28, 1
        %s442 = scalar_select %p441, %s28, 1
        %s443 = scalar_lea.vmem %s6, %s442
        %s444 = sadd.s32 %s28, %s29
        %p445 = scmp.eq.s32.totalorder %s29, 0
        // Predicated region
        $region49: #{tpu_custom_call.1} parent=35 // pred_check
          %p446 = pneg %p445
        $region50: #{tpu_custom_call.1} parent=35 // pred_check_branch
          %448 = sbr.rel (%p446) target = $region52
        $region51: #{tpu_custom_call.1} parent=35 // pred_region
          %449 = vst [vmem:[#allocation2] sm:$0x1] 0.0
          %450 = vst [vmem:[#allocation3] sm:$0x1] 0.0
          %451 = vst [vmem:[#allocation4] sm:$0x1] 0.0
        $region52: #{tpu_custom_call.1} parent=35 // pred_fallthru
          _
        %p452 = scmp.lt.s32.totalorder %s444, 1
        // Predicated region
        $region53: #{tpu_custom_call.1} parent=35 // pred_check
          %p453 = pneg %p452
        $region54: #{tpu_custom_call.1} parent=35 // pred_check_branch
          %455 = sbr.rel (%p453) target = $region56
        $region55: #{tpu_custom_call.1} parent=35 // pred_region
          %v456 = vld [vmem:[%s348] sm:$0xff]
          %v457 = vld [vmem:[#allocation2] sm:$0x1]
          %v458 = vlog2.pop %v456
          %v459 = vmul.f32 %v458, 0.6931472
          %v460 = vrot.slane %v459, 4
          %v461 = vadd.f32 %v459, %v460
          %v462 = vrot.slane %v461, 2
          %v463 = vadd.f32 %v461, %v462
          %v464 = vrot.slane %v463, 1
          %v465 = vadd.f32 %v463, %v464
          %v466 = vadd.f32 %v457, %v465
          %467 = vst [vmem:[#allocation2] sm:$0x1] %v466
          %v468 = vld [vmem:[%s423] sm:$0x1]
          %v469 = vld [vmem:[#allocation3] sm:$0x1]
          %v470 = vlog2.pop %v468
          %v471 = vmul.f32 %v470, 0.6931472
          %v472 = vadd.f32 %v471, 0.0
          %v473 = vadd.f32 %v469, %v472
          %474 = vst [vmem:[#allocation3] sm:$0x1] %v473
          %v475 = vld [vmem:[%s357] sm:$0xff]
          %v476 = vld [vmem:[%s357 + $0x8] sm:$0xf]
          %v477 = vld [vmem:[%s366] sm:$0xff]
          %v478 = vld [vmem:[%s366 + $0x8] sm:$0xf]
          %v479 = vsub.f32 %v475, %v477
          %v480 = vsub.f32 %v476, %v478
          %v481 = vld [vmem:[#allocation4] sm:$0x1]
          %v482 = vmul.f32 %v479, %v479
          %v483 = vmul.f32 %v480, %v480
          %vm484 = vcmask 1043456
          %v485 = vsel %vm484, %v483, 0.0
          %v486 = vadd.f32 %v482, %v485
          %v487 = vrot.slane %v486, 4
          %v488 = vadd.f32 %v486, %v487
          %v489 = vrot.slane %v488, 2
          %v490 = vadd.f32 %v488, %v489
          %v491 = vrot.slane %v490, 1
          %v492 = vadd.f32 %v490, %v491
          %v493 = vadd.f32 %v481, %v492
          %494 = vst [vmem:[#allocation4] sm:$0x1] %v493
        $region56: #{tpu_custom_call.1} parent=35 // pred_fallthru
          _
        // Predicated region
        $region57: #{tpu_custom_call.1} parent=35 // pred_check
          %p495 = pneg %p445
        $region58: #{tpu_custom_call.1} parent=35 // pred_check_branch
          %497 = sbr.rel (%p495) target = $region60
        $region59: #{tpu_custom_call.1} parent=35 // pred_region
          %v498 = vld [vmem:[#allocation2] sm:$0x1]
          %vm499 = vcmask 1040384
          %v500 = vsel %vm499, %v498, 0.0
          %501 = vadd.xlane.f32.xlu0 %v500
          %v502 = vpop.xlane.xlu0 %501
          %v503 = vrot.slane %v502, 4
          %v504 = vadd.f32 %v502, %v503
          %v505 = vrot.slane %v504, 2
          %v506 = vadd.f32 %v504, %v505
          %v507 = vrot.slane %v506, 1
          %v508 = vadd.f32 %v506, %v507
          %s509 = vtos %v508
          %v510 = vstv %s509
          %vm511 = vcmask 0
          %512 = vst.msk [vmem:[%s437] sm:$0x1] %vm511, %v510
          %v513 = vld [vmem:[#allocation3] sm:$0x1]
          %v514 = vsel %vm499, %v513, 0.0
          %515 = vadd.xlane.f32.xlu0 %v514
          %v516 = vpop.xlane.xlu0 %515
          %v517 = vrot.slane %v516, 4
          %v518 = vadd.f32 %v516, %v517
          %v519 = vrot.slane %v518, 2
          %v520 = vadd.f32 %v518, %v519
          %v521 = vrot.slane %v520, 1
          %v522 = vadd.f32 %v520, %v521
          %s523 = vtos %v522
          %v524 = vstv %s523
          %525 = vst.msk [vmem:[%s440] sm:$0x1] %vm511, %v524
          %v526 = vld [vmem:[#allocation4] sm:$0x1]
          %v527 = vsel %vm499, %v526, 0.0
          %528 = vadd.xlane.f32.xlu0 %v527
          %v529 = vpop.xlane.xlu0 %528
          %v530 = vrot.slane %v529, 4
          %v531 = vadd.f32 %v529, %v530
          %v532 = vrot.slane %v531, 2
          %v533 = vadd.f32 %v531, %v532
          %v534 = vrot.slane %v533, 1
          %v535 = vadd.f32 %v533, %v534
          %s536 = vtos %v535
          %v537 = vstv %s536
          %538 = vst.msk [vmem:[%s443] sm:$0x1] %vm511, %v537
        $region60: #{tpu_custom_call.1} parent=35 // pred_fallthru
          _
        %p539 = scmp.lt.s32.totalorder %s28, 1
        %s540 = scalar_select %p539, %s28, 1
        %s541 = scalar_lea.vmem %s4, %s540
        %p542 = scmp.lt.s32.totalorder %s28, 1
        %s543 = scalar_select %p542, %s28, 1
        %s544 = scalar_lea.vmem %s5, %s543
        %p545 = scmp.lt.s32.totalorder %s28, 1
        %s546 = scalar_select %p545, %s28, 1
        %s547 = scalar_lea.vmem %s6, %s546
        // Predicated region
        $region61: #{tpu_custom_call.1} parent=35 // pred_check
          %p548 = pneg %p182
        $region62: #{tpu_custom_call.1} parent=35 // pred_check_branch
          %550 = sbr.rel (%p548) target = $region64
        $region63: #{tpu_custom_call.1} parent=35 // pred_region
          _
        $region64: #{tpu_custom_call.1} parent=35 // pred_fallthru
          _
        // Predicated region
        $region65: #{tpu_custom_call.1} parent=35 // pred_check
          %p551 = pneg %p208
        $region66: #{tpu_custom_call.1} parent=35 // pred_check_branch
          %553 = sbr.rel (%p551) target = $region68
        $region67: #{tpu_custom_call.1} parent=35 // pred_region
          _
        $region68: #{tpu_custom_call.1} parent=35 // pred_fallthru
          _
        // Predicated region
        $region69: #{tpu_custom_call.1} parent=35 // pred_check
          %p554 = pneg %p234
        $region70: #{tpu_custom_call.1} parent=35 // pred_check_branch
          %556 = sbr.rel (%p554) target = $region72
        $region71: #{tpu_custom_call.1} parent=35 // pred_region
          _
        $region72: #{tpu_custom_call.1} parent=35 // pred_fallthru
          _
      $region36: #{tpu_custom_call.1} parent=5 // pred_fallthru
        _
      %p557 = scmp.le.s32.totalorder 2, %s19
      // Predicated region
      $region73: #{tpu_custom_call.1} parent=5 // pred_check
        %p558 = pneg %p557
      $region74: #{tpu_custom_call.1} parent=5 // pred_check_branch
        %560 = sbr.rel (%p558) target = $region76
      $region75: #{tpu_custom_call.1} parent=5 // pred_region
        %s561 = ssub.s32 %s19, 2
        // Predicated region
        $region77: #{tpu_custom_call.1} parent=75 // pred_check
          %p562 = pneg %p188
        $region78: #{tpu_custom_call.1} parent=75 // pred_check_branch
          %564 = sbr.rel (%p562) target = $region80
        $region79: #{tpu_custom_call.1} parent=75 // pred_region
          %p565 = scmp.lt.s32.totalorder %s30, 1
          %s566 = scalar_select %p565, %s30, 1
          %s567 = scalar_lea.vmem %s4, %s566
        $region80: #{tpu_custom_call.1} parent=75 // pred_fallthru
          _
        // Predicated region
        $region81: #{tpu_custom_call.1} parent=75 // pred_check
          %p568 = pneg %p214
        $region82: #{tpu_custom_call.1} parent=75 // pred_check_branch
          %570 = sbr.rel (%p568) target = $region84
        $region83: #{tpu_custom_call.1} parent=75 // pred_region
          %p571 = scmp.lt.s32.totalorder %s30, 1
          %s572 = scalar_select %p571, %s30, 1
          %s573 = scalar_lea.vmem %s5, %s572
        $region84: #{tpu_custom_call.1} parent=75 // pred_fallthru
          _
        // Predicated region
        $region85: #{tpu_custom_call.1} parent=75 // pred_check
          %p574 = pneg %p240
        $region86: #{tpu_custom_call.1} parent=75 // pred_check_branch
          %576 = sbr.rel (%p574) target = $region88
        $region87: #{tpu_custom_call.1} parent=75 // pred_region
          %p577 = scmp.lt.s32.totalorder %s30, 1
          %s578 = scalar_select %p577, %s30, 1
          %s579 = scalar_lea.vmem %s6, %s578
        $region88: #{tpu_custom_call.1} parent=75 // pred_fallthru
          _
      $region76: #{tpu_custom_call.1} parent=5 // pred_fallthru
        _
    $region6: #{tpu_custom_call.1} parent=1 // loop_footer
      %s23 = sadd.s32 1, %s19
    $region7: #{tpu_custom_call.1} parent=1 // loop_footer_branch
      %18 = sbr.rel target = $region3
    $region8: #{tpu_custom_call.1} parent=1 // loop_exit
      _
    %580 = vsyncpa [#allocation6], 1
    %s581 = scalar_lea.sflag [#allocation6], 1
    %582 = vsyncpa %s581, 1
    %583 = vsyncpa [#allocation8], 1
    %s584 = scalar_lea.sflag [#allocation8], 1
    %585 = vsyncpa %s584, 1

</llo_original>
